<compile_context>
chip_gen: v7x
topology: tpu7x:2x2x1
jax: 0.10.0
libtpu: 0.0.40
codegen_flags: <defaults>
</compile_context>

<pallas_src>
import jax
import jax.numpy as jnp
from jax.experimental import pallas as pl
from jax.experimental.pallas import tpu as pltpu


def _round_up(x, m):
    return (x + m - 1) // m * m


def _split(dim, cap, align):
    """Split `dim` into the fewest even `align`-aligned tiles of size <= cap.

    Returns (tile, padded_dim) with padded_dim == tile * num_tiles.  This
    minimises padding waste compared to rounding `dim` up to a full `cap`
    tile (e.g. B=520, cap=512 -> tile=264, padded=528 instead of 1024).
    """
    cap = max(align, cap // align * align)
    dim_a = _round_up(dim, align)
    n = -(-dim_a // cap)                       # number of tiles
    tile = _round_up(-(-dim_a // n), align)    # smallest even tile, aligned
    return tile, tile * n


def _linear_kernel(x_ref, w_ref, b_ref, o_ref):
    # x_ref: (tm, tk)  activations tile
    # w_ref: (tk, tn)  weight tile, already transposed to (F, O) in the wrapper
    # b_ref: (1,  tn)  bias tile
    # o_ref: (tm, tn)  f32 output tile — also the accumulator: its block index
    #                  is constant along the k grid axis, so it stays resident
    #                  in VMEM across the whole reduction (no scratch needed).
    k = pl.program_id(2)

    @pl.when(k == 0)
    def _init():
        o_ref[...] = jnp.zeros_like(o_ref)

    o_ref[...] += jnp.dot(x_ref[...], w_ref[...],
                          preferred_element_type=jnp.float32)

    @pl.when(k == pl.num_programs(2) - 1)
    def _finalize():
        o_ref[...] += b_ref[...]


def logistic_regression_forward(x, weight, bias, *, tm_cap=512, tn_cap=1024,
                                tk_cap=2048, compute_dtype=None,
                                force_pallas=False):
    """y = x @ weight.T + bias  (torch.nn.Linear semantics).

    x:      (B, F) float32
    weight: (O, F) float32   (PyTorch Linear weight layout)
    bias:   (O,)   float32
    returns (B, O) float32
    """
    B, F = x.shape
    O = weight.shape[0]

    # --- tile / padding selection --------------------------------------------
    tm, Bp = _split(B, tm_cap, 8)          # batch rows: sublane-aligned
    tn, Op = _split(O, tn_cap, 128)        # output cols: lane-dense stores
    if F <= 128:
        tk, Fp = F, F                      # full-dim K block: no F padding
    else:
        tk, Fp = _split(F, tk_cap, 128)

    grid = (Bp // tm, Op // tn, Fp // tk)

    # Degenerate single-step grid: a pallas_call is pure launch/DMA overhead.
    if grid == (1, 1, 1) and not force_pallas:
        return (jnp.dot(x, weight.T) + bias).astype(jnp.float32)

    # --- operand prep ----------------------------------------------------------
    # One-time (O,F)->(F,O) transpose so the kernel contracts ((1,),(0,)) with
    # no risk of a per-k-step XLU transpose; amortized over all batch tiles.
    wT = weight.T
    xp = x if (Bp == B and Fp == F) else jnp.pad(x, ((0, Bp - B), (0, Fp - F)))
    wp = wT if (Fp == F and Op == O) else jnp.pad(wT, ((0, Fp - F), (0, Op - O)))
    bp = (bias if Op == O else jnp.pad(bias, (0, Op - O)))
    bp = bp.reshape(1, Op).astype(jnp.float32)

    if compute_dtype is not None:          # e.g. jnp.bfloat16: halves HBM bytes
        xp = xp.astype(compute_dtype)
        wp = wp.astype(compute_dtype)

    # --- VMEM budget -----------------------------------------------------------
    # double-buffered x/w input tiles + double-buffered f32 output tile + bias.
    itemsize = jnp.dtype(xp.dtype).itemsize
    vmem_est = 2 * (tm * tk + tk * tn) * itemsize + 2 * tm * tn * 4 + 2 * tn * 4
    vmem_limit = int(min(48 * 1024 * 1024,
                         max(32 * 1024 * 1024, int(vmem_est * 1.5))))

    out = pl.pallas_call(
        _linear_kernel,
        out_shape=jax.ShapeDtypeStruct((Bp, Op), jnp.float32),
        grid_spec=pltpu.PrefetchScalarGridSpec(
            num_scalar_prefetch=0,
            grid=grid,
            in_specs=[
                pl.BlockSpec((tm, tk), lambda i, j, k: (i, k)),   # x tile
                pl.BlockSpec((tk, tn), lambda i, j, k: (k, j)),   # W.T tile
                pl.BlockSpec((1, tn), lambda i, j, k: (0, j)),    # bias tile
            ],
            out_specs=pl.BlockSpec((tm, tn), lambda i, j, k: (i, j)),
        ),
        compiler_params=pltpu.CompilerParams(
            # batch / output-N parallel (2-TC sharding on v7x), reduction last.
            dimension_semantics=("parallel", "parallel", "arbitrary"),
            vmem_limit_bytes=vmem_limit,
        ),
        cost_estimate=pl.CostEstimate(
            flops=2 * Bp * Fp * Op,
            # weight is re-streamed once per batch-row tile.
            bytes_accessed=itemsize * (Bp * Fp + grid[0] * Fp * Op)
                           + 4 * Bp * Op + 4 * Op,
            transcendentals=0,
        ),
    )(xp, wp, bp)

    if Bp != B or Op != O:
        out = out[:B, :O]
    return out


if __name__ == "__main__":
    # Shapes implied by the module: Linear(num_feature, output_size).
    num_feature = 32
    output_size = 16
    batch = 8

    key = jax.random.PRNGKey(0)
    kx, kw, kb = jax.random.split(key, 3)

    x = jax.random.normal(kx, (batch, num_feature), dtype=jnp.float32)
    bound = 1.0 / (num_feature ** 0.5)
    weight = jax.random.uniform(
        kw, (output_size, num_feature), minval=-bound, maxval=bound,
        dtype=jnp.float32)
    bias = jax.random.uniform(
        kb, (output_size,), minval=-bound, maxval=bound, dtype=jnp.float32)

    # Toy shape: force the Pallas path so the kernel actually runs.
    y = jax.block_until_ready(
        logistic_regression_forward(x, weight, bias, force_pallas=True))
    y_ref = x @ weight.T + bias
    assert y.shape == (batch, output_size)
    assert jnp.allclose(y, y_ref, atol=1e-5, rtol=1e-5)

    # Multi-tile path: exercises the pipelined reduction, bias-once finalize,
    # and padded-row/col slice-off with small tile caps.
    B2, F2, O2 = 272, 384, 256
    k2x, k2w, k2b = jax.random.split(jax.random.PRNGKey(0), 3)
    x2 = jax.random.normal(k2x, (B2, F2), dtype=jnp.float32)
    w2 = jax.random.normal(k2w, (O2, F2), dtype=jnp.float32) * 0.05
    b2 = jax.random.normal(k2b, (O2,), dtype=jnp.float32)
    y2 = jax.block_until_ready(
        logistic_regression_forward(x2, w2, b2,
                                    tm_cap=128, tn_cap=128, tk_cap=128))
    y2_ref = x2 @ w2.T + b2
    assert y2.shape == (B2, O2)
    assert jnp.allclose(y2, y2_ref, atol=1e-3, rtol=1e-3)

    print("KERNEL_OK")
</pallas_src>

<mosaic_0001>
module attributes {stable_mosaic.version = 11 : i64} {
  func.func @_linear_kernel(%arg0: i32, %arg1: i32, %arg2: i32, %arg3: memref<8x32xf32, #tpu.memory_space<vmem>>, %arg4: memref<32x128xf32, #tpu.memory_space<vmem>>, %arg5: memref<1x128xf32, #tpu.memory_space<vmem>>, %arg6: memref<8x128xf32, #tpu.memory_space<vmem>>) attributes {dimension_semantics = [#tpu.dimension_semantics<parallel>, #tpu.dimension_semantics<parallel>, #tpu.dimension_semantics<arbitrary>], iteration_bounds = array<i64: 1, 1, 1>, scalar_prefetch = 0 : i64, scratch_operands = 0 : i64, tpu.core_type = #tpu.core_type<tc>, window_params = [{transform_indices = @transform_0, window_bounds = array<i64: 8, 32>}, {transform_indices = @transform_1, window_bounds = array<i64: 32, 128>}, {transform_indices = @transform_2, window_bounds = array<i64: 1, 128>}, {transform_indices = @transform_3, window_bounds = array<i64: 8, 128>}]} {
    %c0_i32 = arith.constant 0 : i32
    %0 = arith.cmpi eq, %arg2, %c0_i32 : i32
    %1 = arith.extui %0 : i1 to i32
    %c0_i32_0 = arith.constant 0 : i32
    %2 = arith.cmpi ne, %1, %c0_i32_0 : i32
    scf.if %2 {
      %cst_10 = arith.constant 0.000000e+00 : f32
      %12 = vector.broadcast %cst_10 : f32 to vector<8x128xf32>
      %c0_11 = arith.constant 0 : index
      %c0_12 = arith.constant 0 : index
      %13 = vector.load %arg6[%c0_11, %c0_12] : memref<8x128xf32, #tpu.memory_space<vmem>>, vector<8x128xf32>
      tpu.vector_store %arg6[%c0_11, %c0_12], %12 {strides = array<i32>} : memref<8x128xf32, #tpu.memory_space<vmem>>, vector<8x128xf32>,
    } else {
    }
    %c0 = arith.constant 0 : index
    %c0_1 = arith.constant 0 : index
    %3 = vector.load %arg6[%c0, %c0_1] : memref<8x128xf32, #tpu.memory_space<vmem>>, vector<8x128xf32>
    %c0_2 = arith.constant 0 : index
    %c0_3 = arith.constant 0 : index
    %4 = vector.load %arg3[%c0_2, %c0_3] : memref<8x32xf32, #tpu.memory_space<vmem>>, vector<8x32xf32>
    %c0_4 = arith.constant 0 : index
    %c0_5 = arith.constant 0 : index
    %5 = vector.load %arg4[%c0_4, %c0_5] : memref<32x128xf32, #tpu.memory_space<vmem>>, vector<32x128xf32>
    %cst = arith.constant dense<0.000000e+00> : vector<8x128xf32>
    %6 = tpu.matmul %4, %5, %cst {dimension_numbers = #tpu.dot_dimension_numbers<[1], [0], [0], [1], [0, 0, 1, 1], [], []>} : vector<8x32xf32>, vector<32x128xf32>, vector<8x128xf32> -> vector<8x128xf32>
    %7 = arith.addf %3, %6 : vector<8x128xf32>
    %c0_6 = arith.constant 0 : index
    %c0_7 = arith.constant 0 : index
    %8 = vector.load %arg6[%c0_6, %c0_7] : memref<8x128xf32, #tpu.memory_space<vmem>>, vector<8x128xf32>
    tpu.vector_store %arg6[%c0_6, %c0_7], %7 {strides = array<i32>} : memref<8x128xf32, #tpu.memory_space<vmem>>, vector<8x128xf32>,
    %c0_i32_8 = arith.constant 0 : i32
    %9 = arith.cmpi eq, %arg2, %c0_i32_8 : i32
    %10 = arith.extui %9 : i1 to i32
    %c0_i32_9 = arith.constant 0 : i32
    %11 = arith.cmpi ne, %10, %c0_i32_9 : i32
    scf.if %11 {
      %c0_10 = arith.constant 0 : index
      %c0_11 = arith.constant 0 : index
      %12 = vector.load %arg6[%c0_10, %c0_11] : memref<8x128xf32, #tpu.memory_space<vmem>>, vector<8x128xf32>
      %c0_12 = arith.constant 0 : index
      %c0_13 = arith.constant 0 : index
      %13 = vector.load %arg5[%c0_12, %c0_13] : memref<1x128xf32, #tpu.memory_space<vmem>>, vector<1x128xf32>
      %14 = vector.broadcast %13 : vector<1x128xf32> to vector<8x128xf32>
      %15 = arith.addf %12, %14 : vector<8x128xf32>
      %c0_14 = arith.constant 0 : index
      %c0_15 = arith.constant 0 : index
      %16 = vector.load %arg6[%c0_14, %c0_15] : memref<8x128xf32, #tpu.memory_space<vmem>>, vector<8x128xf32>
      tpu.vector_store %arg6[%c0_14, %c0_15], %15 {strides = array<i32>} : memref<8x128xf32, #tpu.memory_space<vmem>>, vector<8x128xf32>,
    } else {
    }
    return
  }
  func.func @transform_0(%arg0: i32, %arg1: i32, %arg2: i32) -> (i32, i32) {
    %c0_i32 = arith.constant 0 : i32
    return %arg0, %arg2 : i32, i32
  }
  func.func @transform_1(%arg0: i32, %arg1: i32, %arg2: i32) -> (i32, i32) {
    %c0_i32 = arith.constant 0 : i32
    return %arg2, %arg1 : i32, i32
  }
  func.func @transform_2(%arg0: i32, %arg1: i32, %arg2: i32) -> (i32, i32) {
    %c0_i32 = arith.constant 0 : i32
    %c0_i32_0 = arith.constant 0 : i32
    return %c0_i32, %arg1 : i32, i32
  }
  func.func @transform_3(%arg0: i32, %arg1: i32, %arg2: i32) -> (i32, i32) {
    %c0_i32 = arith.constant 0 : i32
    return %arg0, %arg1 : i32, i32
  }
}

</mosaic_0001>

<llo_original>
// kernel: tpu_custom_call.1
$region0: #{tpu_custom_call.1}
  #allocation0 [shape = 'u32[]', space=smem, size = 0x4, offset = 0x4, fixed_abs, tag = 'smem constant byte address 0x4 - core index']
  #allocation1 [shape = 'u32[144,128]{1,0:T(1,128)}', space=vmem, size = 0x12000, scoped, tag = 'internal scratch']
  %s0 = inlined_call_operand.hbm [shape: f32[8,32], index: 0, kind: input, shape index: {}]
  %s1 = inlined_call_operand.hbm [shape: f32[32,128], index: 1, kind: input, shape index: {}]
  %s2 = inlined_call_operand.vmem [shape: f32[1,128], index: 2, kind: input, shape index: {}]
  %s3 = inlined_call_operand.hbm [shape: f32[8,128], index: 3, kind: output, shape index: {}]
  %s4 = sld [smem:[#allocation0]]
  $region38: #{tpu_custom_call.1} parent=0
    _
  %s6 = ssub.s32 1, %s4
  %s7 = scalar_select 0, %s6, %s4
  $region1: #{tpu_custom_call.1} parent=0
    #allocation2 [shape = 'u8[4096]{0}', space=vmem, size = 0x1000, scoped, tag = 'input window, operand 0, single buffered']
    #allocation3 [shape = 's32[1]{0}', space=sflag, size = 0x4, scoped, tag = 'scoped memory for tpu_custom_call.1']
    #allocation4 [shape = 's32[1]{0}', space=sflag, size = 0x4, scoped, tag = 'scoped memory for tpu_custom_call.1']
    #allocation5 [shape = 'u8[16384]{0}', space=vmem, size = 0x4000, scoped, tag = 'input window, operand 1, single buffered']
    #allocation6 [shape = 's32[1]{0}', space=sflag, size = 0x4, scoped, tag = 'scoped memory for tpu_custom_call.1']
    #allocation7 [shape = 'u8[4096]{0}', space=vmem, size = 0x1000, scoped, tag = 'output window, operand 0, single buffered']
    %8 = vsyncpa [#allocation3], 0
    %9 = vsyncpa [#allocation6], 0
    %10 = vsyncpa [#allocation4], 0
    // Predicated region
    $region2: #{tpu_custom_call.1} parent=1 // pred_check
      _
    $region3: #{tpu_custom_call.1} parent=1 // pred_check_branch
      %12 = sbr.rel (0) target = $region5
    $region4: #{tpu_custom_call.1} parent=1 // pred_region
      %s14 = ssub.s32 128, 128
      %15 = vsyncadd [#allocation3], %s14
      %s17 = sshll.u32 [#allocation2], 4
      %s18 = int_to_ptr.vmem [resolvable:$true] %s17
      %20 = dma.hbm_to_vmem [thread:$0]  %s0, 128, %s18, [#allocation3]
    $region5: #{tpu_custom_call.1} parent=1 // pred_fallthru
      _
    // Predicated region
    $region6: #{tpu_custom_call.1} parent=1 // pred_check
      _
    $region7: #{tpu_custom_call.1} parent=1 // pred_check_branch
      %22 = sbr.rel (0) target = $region9
    $region8: #{tpu_custom_call.1} parent=1 // pred_region
      %s24 = ssub.s32 512, 512
      %25 = vsyncadd [#allocation6], %s24
      %s26 = sshll.u32 [#allocation5], 4
      %s27 = int_to_ptr.vmem [resolvable:$true] %s26
      %32 = dma.hbm_to_vmem [thread:$0]  %s1, 512, %s27, [#allocation6], 128, 128, 8
    $region9: #{tpu_custom_call.1} parent=1 // pred_fallthru
      _
    // Predicated region
    $region10: #{tpu_custom_call.1} parent=1 // pred_check
      _
    $region11: #{tpu_custom_call.1} parent=1 // pred_check_branch
      %34 = sbr.rel (0) target = $region13
    $region12: #{tpu_custom_call.1} parent=1 // pred_region
      _
    $region13: #{tpu_custom_call.1} parent=1 // pred_fallthru
      _
    // Predicated region
    $region14: #{tpu_custom_call.1} parent=1 // pred_check
      _
    $region15: #{tpu_custom_call.1} parent=1 // pred_check_branch
      %36 = sbr.rel (0) target = $region17
    $region16: #{tpu_custom_call.1} parent=1 // pred_region
      %37 = dma.done [#allocation3], 128
    $region17: #{tpu_custom_call.1} parent=1 // pred_fallthru
      _
    // Predicated region
    $region18: #{tpu_custom_call.1} parent=1 // pred_check
      _
    $region19: #{tpu_custom_call.1} parent=1 // pred_check_branch
      %39 = sbr.rel (0) target = $region21
    $region20: #{tpu_custom_call.1} parent=1 // pred_region
      %40 = dma.done [#allocation6], 512
    $region21: #{tpu_custom_call.1} parent=1 // pred_fallthru
      _
    %p41 = scmp.eq.s32.totalorder 0, 0
    // Predicated region
    $region22: #{tpu_custom_call.1} parent=1 // pred_check
      %p42 = pneg %p41
    $region23: #{tpu_custom_call.1} parent=1 // pred_check_branch
      %44 = sbr.rel (%p42) target = $region25
    $region24: #{tpu_custom_call.1} parent=1 // pred_region
      %45 = vst [vmem:[#allocation7] sm:$0xff] 0.0
    $region25: #{tpu_custom_call.1} parent=1 // pred_fallthru
      _
    %v46 = vld [vmem:[#allocation7] sm:$0xff]
    %v47 = vld [vmem:[#allocation2] sm:$0xff]
    %v48 = vld [vmem:[#allocation5] sm:$0xff]
    %v49 = vld [vmem:[#allocation5 + $0x8] sm:$0xff]
    %v50 = vld [vmem:[#allocation5 + $0x10] sm:$0xff]
    %v51 = vld [vmem:[#allocation5 + $0x18] sm:$0xff]
    %vm52 = vcmask 261120
    %v54 = vsel %vm52, %v47, 0
    %56 = vmatprep.subr.mxu0 0.0
    %57 = vmatpush1.msra.mxu0 %v48
    %58 = vmatprep.subr.mxu0 0.0
    %59 = vmatpush1.msra.mxu0 %v49
    %60 = vmatprep.subr.mxu0 0.0
    %61 = vmatpush1.msra.mxu0 %v50
    %62 = vmatprep.subr.mxu0 0.0
    %63 = vmatpush1.msra.mxu0 %v51
    %64 = vmatprep.subr.mxu0 0.0
    %65 = vmatpush1.msra.mxu0 0.0
    %66 = vmatprep.subr.mxu0 0.0
    %67 = vmatpush1.msra.mxu0 0.0
    %68 = vmatprep.subr.mxu0 0.0
    %69 = vmatpush1.msra.mxu0 0.0
    %70 = vmatprep.subr.mxu0 0.0
    %71 = vmatpush1.msra.mxu0 0.0
    %72 = vmatprep.subr.mxu0 0.0
    %73 = vmatpush1.msra.mxu0 0.0
    %74 = vmatprep.subr.mxu0 0.0
    %75 = vmatpush1.msra.mxu0 0.0
    %76 = vmatprep.subr.mxu0 0.0
    %77 = vmatpush1.msra.mxu0 0.0
    %78 = vmatprep.subr.mxu0 0.0
    %79 = vmatpush1.msra.mxu0 0.0
    %80 = vmatprep.subr.mxu0 0.0
    %81 = vmatpush1.msra.mxu0 0.0
    %82 = vmatprep.subr.mxu0 0.0
    %83 = vmatpush1.msra.mxu0 0.0
    %84 = vmatprep.subr.mxu0 0.0
    %85 = vmatpush1.msra.mxu0 0.0
    %86 = vmatprep.subr.mxu0 0.0
    %87 = vmatpush1.msra.mxu0 0.0
    %88 = vmatprep.subr.mxu0 0.0
    %89 = vmatpush1.msra.mxu0 0.0
    %90 = vmatprep.subr.mxu0 0.0
    %91 = vmatpush1.msra.mxu0 0.0
    %92 = vmatprep.subr.mxu0 0.0
    %93 = vmatpush1.msra.mxu0 0.0
    %94 = vmatprep.subr.mxu0 0.0
    %95 = vmatpush1.msra.mxu0 0.0
    %96 = vmatprep.subr.mxu0 0.0
    %97 = vmatpush1.msra.mxu0 0.0
    %98 = vmatprep.subr.mxu0 0.0
    %99 = vmatpush1.msra.mxu0 0.0
    %100 = vmatprep.subr.mxu0 0.0
    %101 = vmatpush1.msra.mxu0 0.0
    %102 = vmatprep.subr.mxu0 0.0
    %103 = vmatpush1.msra.mxu0 0.0
    %104 = vmatprep.subr.mxu0 0.0
    %105 = vmatpush1.msra.mxu0 0.0
    %106 = vmatprep.subr.mxu0 0.0
    %107 = vmatpush1.msra.mxu0 0.0
    %108 = vmatprep.subr.mxu0 0.0
    %109 = vmatpush1.msra.mxu0 0.0
    %110 = vmatprep.subr.mxu0 0.0
    %111 = vmatpush1.msra.mxu0 0.0
    %112 = vmatprep.subr.mxu0 0.0
    %113 = vmatpush1.msra.mxu0 0.0
    %114 = vmatprep.subr.mxu0 0.0
    %115 = vmatpush1.msra.mxu0 0.0
    %116 = vmatprep.subr.mxu0 0.0
    %117 = vmatpush1.msra.mxu0 0.0
    %118 = vmatprep.subr.mxu0 0.0
    %119 = vmatpush1.msra.mxu0 0.0
    %120 = vmatprep.mubr.f32.mxu0 0.0
    %121 = vmatmul.mubr.f32.gmra.mrb[0].mxu0 %v54
    %v122 = vpop.f32.mrb[0].mxu0
    %v123 = vadd.f32 0.0, %v122
    %v124 = vpop.f32.mrb[0].mxu0
    %125 = vdwg.mxu0
    %v126 = vadd.f32 %v46, %v123
    %127 = vst [vmem:[#allocation7] sm:$0xff] %v126
    // Predicated region
    $region26: #{tpu_custom_call.1} parent=1 // pred_check
      %p128 = pneg %p41
    $region27: #{tpu_custom_call.1} parent=1 // pred_check_branch
      %130 = sbr.rel (%p128) target = $region29
    $region28: #{tpu_custom_call.1} parent=1 // pred_region
      %v131 = vld [vmem:[#allocation7] sm:$0xff]
      %v132 = vld [vmem:[%s2] sm:$0x1]
      %v134 = vlaneseq
      %v135 = vshrl.u32 %v134, 7
      %v136 = vsub.s32 0, %v135
      %v137 = vrot.slane %v132, %v136
      %v139 = vadd.f32 %v131, %v137
      %140 = vst [vmem:[#allocation7] sm:$0xff] %v139
    $region29: #{tpu_custom_call.1} parent=1 // pred_fallthru
      _
    // Predicated region
    $region30: #{tpu_custom_call.1} parent=1 // pred_check
      _
    $region31: #{tpu_custom_call.1} parent=1 // pred_check_branch
      %142 = sbr.rel (0) target = $region33
    $region32: #{tpu_custom_call.1} parent=1 // pred_region
      %s144 = ssub.s32 128, 128
      %145 = vsyncadd [#allocation4], %s144
      %s147 = sshll.u32 [#allocation7], 4
      %s148 = int_to_ptr.vmem [resolvable:$true] %s147
      %150 = dma.vmem_to_hbm [thread:$0]  %s148, 128, %s3, [#allocation4]
    $region33: #{tpu_custom_call.1} parent=1 // pred_fallthru
      _
    // Predicated region
    $region34: #{tpu_custom_call.1} parent=1 // pred_check
      _
    $region35: #{tpu_custom_call.1} parent=1 // pred_check_branch
      %152 = sbr.rel (0) target = $region37
    $region36: #{tpu_custom_call.1} parent=1 // pred_region
      %153 = dma.done [#allocation4], 128
    $region37: #{tpu_custom_call.1} parent=1 // pred_fallthru
      _
    %154 = vsyncpa [#allocation3], 1
    %155 = vsyncpa [#allocation6], 1
    %156 = vsyncpa [#allocation4], 1

</llo_original>
